<compile_context>
chip_gen: v6e
topology: v6e:2x2x1
jax: 0.10.0
libtpu: 0.0.40
codegen_flags: <defaults>
</compile_context>

<pallas_src>
import functools

import jax
import jax.numpy as jnp
import numpy as np
from jax import lax
from jax.experimental import pallas as pl
from jax.experimental.pallas import tpu as pltpu

NEG_SLOPE = 0.01
EPS = 1e-5
_VMEM_LIMIT = 48 * 1024 * 1024          # fits v7x (64 MiB physical) with headroom


def _leaky(x):
    return jnp.where(x > 0, x, NEG_SLOPE * x)


# ---------------------------------------------------------------------------
# Pallas kernels (per-sample, channels-first (C, TILE_S) tiles, lane axis = S)
# ---------------------------------------------------------------------------
def _conv_stats_kernel(p_ref, w_ref, b_ref, t_ref, sum_ref, ssq_ref):
    """3x3x3 conv as one folded matmul + bias; accumulate per-channel stats.

    p_ref: (1, 27*Cin, TS) bf16    w_ref: (Cout, 27*Cin) bf16
    b_ref: (Cout, 1) f32
    t_ref: (1, Cout, TS) f32       sum_ref / ssq_ref: (1, Cout, 1) f32
                                   (revisited/accumulated across the S axis)
    """
    t = jnp.dot(w_ref[...], p_ref[0],
                preferred_element_type=jnp.float32) + b_ref[...]
    t_ref[0] = t

    @pl.when(pl.program_id(1) == 0)
    def _():
        sum_ref[...] = jnp.zeros_like(sum_ref)
        ssq_ref[...] = jnp.zeros_like(ssq_ref)

    sum_ref[0] += jnp.sum(t, axis=1, keepdims=True)
    ssq_ref[0] += jnp.sum(t * t, axis=1, keepdims=True)


def _norm_lrelu_kernel(t_ref, sum_ref, ssq_ref, g_ref, be_ref, o_ref, *, inv_s):
    """InstanceNorm (from precomputed sum/sumsq) + affine + LeakyReLU."""
    t = t_ref[0]
    mean = sum_ref[0] * inv_s
    var = ssq_ref[0] * inv_s - mean * mean
    xhat = (t - mean) * lax.rsqrt(var + EPS)
    o_ref[0] = _leaky(xhat * g_ref[...] + be_ref[...])


def _norm_scconv_lrelu_kernel(t_ref, sum_ref, ssq_ref, g_ref, be_ref,
                              x_ref, ws_ref, bs_ref, o_ref, *, inv_s):
    """InstanceNorm + affine + 1x1x1-conv shortcut + residual + LeakyReLU."""
    t = t_ref[0]
    mean = sum_ref[0] * inv_s
    var = ssq_ref[0] * inv_s - mean * mean
    h = (t - mean) * lax.rsqrt(var + EPS) * g_ref[...] + be_ref[...]
    sc = jnp.dot(ws_ref[...], x_ref[0],
                 preferred_element_type=jnp.float32) + bs_ref[...]
    o_ref[0] = _leaky(h + sc)


def _norm_scid_lrelu_kernel(t_ref, sum_ref, ssq_ref, g_ref, be_ref,
                            x_ref, o_ref, *, inv_s):
    """InstanceNorm + affine + identity shortcut + LeakyReLU."""
    t = t_ref[0]
    mean = sum_ref[0] * inv_s
    var = ssq_ref[0] * inv_s - mean * mean
    h = (t - mean) * lax.rsqrt(var + EPS) * g_ref[...] + be_ref[...]
    o_ref[0] = _leaky(h + x_ref[0])


# ---------------------------------------------------------------------------
# pallas_call wrappers
# ---------------------------------------------------------------------------
def _conv_stats_pass(patches, w2d, bcol, tile_s):
    n, k, s = patches.shape
    cout = w2d.shape[0]
    return pl.pallas_call(
        _conv_stats_kernel,
        out_shape=(jax.ShapeDtypeStruct((n, cout, s), jnp.float32),
                   jax.ShapeDtypeStruct((n, cout, 1), jnp.float32),
                   jax.ShapeDtypeStruct((n, cout, 1), jnp.float32)),
        grid=(n, s // tile_s),
        in_specs=[
            pl.BlockSpec((1, k, tile_s), lambda i, si: (i, 0, si)),
            pl.BlockSpec((cout, k), lambda i, si: (0, 0)),
            pl.BlockSpec((cout, 1), lambda i, si: (0, 0)),
        ],
        out_specs=(pl.BlockSpec((1, cout, tile_s), lambda i, si: (i, 0, si)),
                   pl.BlockSpec((1, cout, 1), lambda i, si: (i, 0, 0)),
                   pl.BlockSpec((1, cout, 1), lambda i, si: (i, 0, 0))),
        compiler_params=pltpu.CompilerParams(
            dimension_semantics=("parallel", "arbitrary"),
            vmem_limit_bytes=_VMEM_LIMIT),
    )(patches, w2d, bcol)


def _norm_lrelu_pass(t, ssum, ssq, gcol, becol, inv_s, tile_s):
    n, cout, s = t.shape
    return pl.pallas_call(
        functools.partial(_norm_lrelu_kernel, inv_s=inv_s),
        out_shape=jax.ShapeDtypeStruct((n, cout, s), jnp.float32),
        grid=(n, s // tile_s),
        in_specs=[
            pl.BlockSpec((1, cout, tile_s), lambda i, si: (i, 0, si)),
            pl.BlockSpec((1, cout, 1), lambda i, si: (i, 0, 0)),
            pl.BlockSpec((1, cout, 1), lambda i, si: (i, 0, 0)),
            pl.BlockSpec((cout, 1), lambda i, si: (0, 0)),
            pl.BlockSpec((cout, 1), lambda i, si: (0, 0)),
        ],
        out_specs=pl.BlockSpec((1, cout, tile_s), lambda i, si: (i, 0, si)),
        compiler_params=pltpu.CompilerParams(
            dimension_semantics=("parallel", "parallel"),
            vmem_limit_bytes=_VMEM_LIMIT),
    )(t, ssum, ssq, gcol, becol)


def _final_pass(t, ssum, ssq, gcol, becol, x_cs, wsk, bscol, inv_s, tile_s):
    n, cout, s = t.shape
    cin = x_cs.shape[1]
    common_in = [
        pl.BlockSpec((1, cout, tile_s), lambda i, si: (i, 0, si)),
        pl.BlockSpec((1, cout, 1), lambda i, si: (i, 0, 0)),
        pl.BlockSpec((1, cout, 1), lambda i, si: (i, 0, 0)),
        pl.BlockSpec((cout, 1), lambda i, si: (0, 0)),
        pl.BlockSpec((cout, 1), lambda i, si: (0, 0)),
        pl.BlockSpec((1, cin, tile_s), lambda i, si: (i, 0, si)),
    ]
    if wsk is not None:           # 1x1x1 conv shortcut (in_channels != out_channels)
        kernel = functools.partial(_norm_scconv_lrelu_kernel, inv_s=inv_s)
        in_specs = common_in + [pl.BlockSpec((cout, cin), lambda i, si: (0, 0)),
                                pl.BlockSpec((cout, 1), lambda i, si: (0, 0))]
        args = (t, ssum, ssq, gcol, becol, x_cs, wsk, bscol)
    else:                         # nn.Identity shortcut — no matmul, no eye() weights
        kernel = functools.partial(_norm_scid_lrelu_kernel, inv_s=inv_s)
        in_specs = common_in
        args = (t, ssum, ssq, gcol, becol, x_cs)
    return pl.pallas_call(
        kernel,
        out_shape=jax.ShapeDtypeStruct((n, cout, s), jnp.float32),
        grid=(n, s // tile_s),
        in_specs=in_specs,
        out_specs=pl.BlockSpec((1, cout, tile_s), lambda i, si: (i, 0, si)),
        compiler_params=pltpu.CompilerParams(
            dimension_semantics=("parallel", "parallel"),
            vmem_limit_bytes=_VMEM_LIMIT),
    )(*args)


# ---------------------------------------------------------------------------
# Glue (data movement only)
# ---------------------------------------------------------------------------
def _maxpool3d_2(x):
    """MaxPool3d(kernel=2, stride=2), floor mode, NCDHW."""
    n, c, d, h, w = x.shape
    d2, h2, w2 = d // 2, h // 2, w // 2
    x = x[:, :, :2 * d2, :2 * h2, :2 * w2]
    x = x.reshape(n, c, d2, 2, h2, 2, w2, 2)
    return jnp.max(x, axis=(3, 5, 7))


def _im2col_cf(x):
    """(N, C, D, H, W) -> (N, C*27, D*H*W) patches for a 3x3x3 / pad=1 conv.

    Row ordering ci*27 + kd*9 + kh*3 + kw matches weight.reshape(Cout, Cin*27).
    """
    n, c, d, h, w = x.shape
    xp = jnp.pad(x, ((0, 0), (0, 0), (1, 1), (1, 1), (1, 1)))
    taps = []
    for kd in range(3):
        for kh in range(3):
            for kw in range(3):
                taps.append(xp[:, :, kd:kd + d, kh:kh + h, kw:kw + w]
                            .reshape(n, c, 1, d * h * w))
    return jnp.concatenate(taps, axis=2).reshape(n, c * 27, d * h * w)


def _divisors(s):
    out, i = set(), 1
    while i * i <= s:
        if s % i == 0:
            out.add(i)
            out.add(s // i)
        i += 1
    return sorted(out)


def _pick_tile_s(s, k_max, cout):
    """Largest S tile keeping the double-buffered working set within budget."""
    budget = _VMEM_LIMIT - (4 << 20)              # headroom (stats, sems, compiler)
    budget -= 2 * 2 * k_max * cout                # bf16 weights (x2 buffers)
    budget = max(budget, 4 << 20)
    per = 2 * (2 * k_max + 4 * cout)              # bf16 patch + f32 conv-out, dbl-buffered
    cap = max(128, budget // per)
    if s <= cap:
        return s
    divs = _divisors(s)
    for mult in (128, 8, 1):                      # prefer lane-aligned tiles
        good = [ts for ts in divs if ts <= cap and ts % mult == 0]
        if good:
            return max(good)
    return s


# ---------------------------------------------------------------------------
# Forward passes
# ---------------------------------------------------------------------------
def double_conv_pallas(x_ncdhw, params, *, tile_s=None):
    """DoubleConv forward, NCDHW in / NCDHW out."""
    x = x_ncdhw.astype(jnp.float32)
    n, cin, d, h, w = x.shape
    cout = params['w1'].shape[0]
    s = d * h * w
    k1, k2 = 27 * cin, 27 * cout

    if tile_s is None:
        tile_s = _pick_tile_s(s, max(k1, k2), cout)
    assert s % tile_s == 0, f"tile_s={tile_s} must divide S={s}"
    inv_s = 1.0 / float(s)

    col = lambda v: v.reshape(-1, 1).astype(jnp.float32)
    w1k = params['w1'].reshape(cout, k1).astype(jnp.bfloat16)
    w2k = params['w2'].reshape(cout, k2).astype(jnp.bfloat16)

    # conv1 + bias (and per-channel sum / sumsq for the instance norm)
    p1 = _im2col_cf(x.astype(jnp.bfloat16))                  # (N, 27*Cin, S) bf16
    t1, s1, q1 = _conv_stats_pass(p1, w1k, col(params['b1']), tile_s)

    # InstanceNorm1 + LeakyReLU
    h1 = _norm_lrelu_pass(t1, s1, q1, col(params['g1']), col(params['be1']),
                          inv_s, tile_s)                     # (N, Cout, S) f32

    # conv2 + bias (and stats)
    p2 = _im2col_cf(h1.astype(jnp.bfloat16).reshape(n, cout, d, h, w))
    t2, s2, q2 = _conv_stats_pass(p2, w2k, col(params['b2']), tile_s)

    # InstanceNorm2 + shortcut + residual + LeakyReLU
    x_cs = x.reshape(n, cin, s)
    if params.get('ws') is not None:
        wsk = params['ws'].reshape(cout, cin).astype(jnp.float32)
        bsc = col(params['bs'])
    else:
        wsk, bsc = None, None
    y = _final_pass(t2, s2, q2, col(params['g2']), col(params['be2']),
                    x_cs, wsk, bsc, inv_s, tile_s)
    return y.reshape(n, cout, d, h, w)


def down_pallas(x_ncdhw, params, *, tile_s=None):
    """Down = MaxPool3d(2) -> DoubleConv."""
    return double_conv_pallas(_maxpool3d_2(x_ncdhw.astype(jnp.float32)),
                              params, tile_s=tile_s)


# ---------------------------------------------------------------------------
# Pure-JAX reference (f32 / HIGHEST precision ground truth)
# ---------------------------------------------------------------------------
def double_conv_ref(x, params):
    prec = lax.Precision.HIGHEST

    def conv(x, wt, b, pad):
        y = lax.conv_general_dilated(
            x, wt, (1, 1, 1), [(pad, pad)] * 3,
            dimension_numbers=('NCDHW', 'OIDHW', 'NCDHW'), precision=prec)
        return y + b[None, :, None, None, None]

    def inorm(x, g, be):
        m = jnp.mean(x, axis=(2, 3, 4), keepdims=True)
        v = jnp.mean((x - m) ** 2, axis=(2, 3, 4), keepdims=True)
        return ((x - m) * lax.rsqrt(v + EPS) * g[None, :, None, None, None]
                + be[None, :, None, None, None])

    h = _leaky(inorm(conv(x, params['w1'], params['b1'], 1),
                     params['g1'], params['be1']))
    h = inorm(conv(h, params['w2'], params['b2'], 1),
              params['g2'], params['be2'])
    sc = (conv(x, params['ws'], params['bs'], 0)
          if params.get('ws') is not None else x)
    return _leaky(h + sc)


def down_ref(x, params):
    return double_conv_ref(_maxpool3d_2(x.astype(jnp.float32)), params)


# ---------------------------------------------------------------------------
if __name__ == "__main__":
    def make_params(key, cin, cout, identity_shortcut):
        ks = jax.random.split(key, 10)
        p = {
            'w1': 0.1 * jax.random.normal(ks[0], (cout, cin, 3, 3, 3), jnp.float32),
            'b1': 0.1 * jax.random.normal(ks[1], (cout,), jnp.float32),
            'g1': 1.0 + 0.1 * jax.random.normal(ks[2], (cout,), jnp.float32),
            'be1': 0.1 * jax.random.normal(ks[3], (cout,), jnp.float32),
            'w2': 0.1 * jax.random.normal(ks[4], (cout, cout, 3, 3, 3), jnp.float32),
            'b2': 0.1 * jax.random.normal(ks[5], (cout,), jnp.float32),
            'g2': 1.0 + 0.1 * jax.random.normal(ks[6], (cout,), jnp.float32),
            'be2': 0.1 * jax.random.normal(ks[7], (cout,), jnp.float32),
        }
        if identity_shortcut:
            p['ws'], p['bs'] = None, None
        else:
            p['ws'] = 0.1 * jax.random.normal(ks[8], (cout, cin, 1, 1, 1), jnp.float32)
            p['bs'] = 0.1 * jax.random.normal(ks[9], (cout,), jnp.float32)
        return p

    k1, k2, k3, k4 = jax.random.split(jax.random.PRNGKey(0), 4)
    # Matmuls run at bf16-level MXU precision (per perf guidance) vs an f32
    # HIGHEST-precision reference -> tolerance relaxed accordingly.
    RTOL = ATOL = 5e-2

    # Case 1: Down(4 -> 8), 16^3 input (pooled 8^3, S=512), conv shortcut.
    N, Cin, Cout, D = 2, 4, 8, 16
    params = make_params(k1, Cin, Cout, identity_shortcut=False)
    x = jax.random.normal(k2, (N, Cin, D, D, D), jnp.float32)

    y = jax.block_until_ready(down_pallas(x, params))
    y_ref = jax.block_until_ready(down_ref(x, params))
    assert y.shape == (N, Cout, D // 2, D // 2, D // 2) and y.dtype == jnp.float32
    np.testing.assert_allclose(np.asarray(y), np.asarray(y_ref), rtol=RTOL, atol=ATOL)

    # Same case, forced small S tile -> exercises cross-tile instance-norm stats.
    y_t = jax.block_until_ready(down_pallas(x, params, tile_s=128))
    np.testing.assert_allclose(np.asarray(y_t), np.asarray(y_ref), rtol=RTOL, atol=ATOL)

    # Case 2: Down(8 -> 8), identity shortcut, 12^3 input (pooled S=216, not /128).
    params2 = make_params(k3, 8, 8, identity_shortcut=True)
    x2 = jax.random.normal(k4, (2, 8, 12, 12, 12), jnp.float32)
    y2 = jax.block_until_ready(down_pallas(x2, params2))
    y2_ref = jax.block_until_ready(down_ref(x2, params2))
    np.testing.assert_allclose(np.asarray(y2), np.asarray(y2_ref), rtol=RTOL, atol=ATOL)

    print("KERNEL_OK")
</pallas_src>

<mosaic_0001>
module attributes {stable_mosaic.version = 11 : i64} {
  func.func @_conv_stats_kernel(%arg0: i32, %arg1: i32, %arg2: memref<1x108x512xbf16, #tpu.memory_space<vmem>>, %arg3: memref<8x108xbf16, #tpu.memory_space<vmem>>, %arg4: memref<8x1xf32, #tpu.memory_space<vmem>>, %arg5: memref<1x8x512xf32, #tpu.memory_space<vmem>>, %arg6: memref<1x8x1xf32, #tpu.memory_space<vmem>>, %arg7: memref<1x8x1xf32, #tpu.memory_space<vmem>>) attributes {dimension_semantics = [#tpu.dimension_semantics<parallel>, #tpu.dimension_semantics<arbitrary>], iteration_bounds = array<i64: 2, 1>, scalar_prefetch = 0 : i64, scratch_operands = 0 : i64, tpu.core_type = #tpu.core_type<tc>, window_params = [{transform_indices = @transform_0, window_bounds = array<i64: 1, 108, 512>}, {pipeline_mode = #tpu.pipeline_mode<synchronous>, transform_indices = @transform_1, window_bounds = array<i64: 8, 108>}, {pipeline_mode = #tpu.pipeline_mode<synchronous>, transform_indices = @transform_2, window_bounds = array<i64: 8, 1>}, {transform_indices = @transform_3, window_bounds = array<i64: 1, 8, 512>}, {transform_indices = @transform_4, window_bounds = array<i64: 1, 8, 1>}, {transform_indices = @transform_5, window_bounds = array<i64: 1, 8, 1>}]} {
    %c0 = arith.constant 0 : index
    %c0_0 = arith.constant 0 : index
    %0 = vector.load %arg3[%c0, %c0_0] : memref<8x108xbf16, #tpu.memory_space<vmem>>, vector<8x108xbf16>
    %c0_1 = arith.constant 0 : index
    %c0_2 = arith.constant 0 : index
    %c0_3 = arith.constant 0 : index
    %1 = vector.load %arg2[%c0_1, %c0_2, %c0_3] : memref<1x108x512xbf16, #tpu.memory_space<vmem>>, vector<1x108x512xbf16>
    %2 = vector.shape_cast %1 : vector<1x108x512xbf16> to vector<108x512xbf16>
    %cst = arith.constant dense<0.000000e+00> : vector<8x512xf32>
    %3 = tpu.matmul %0, %2, %cst {dimension_numbers = #tpu.dot_dimension_numbers<[1], [0], [0], [1], [0, 0, 1, 1], [], []>} : vector<8x108xbf16>, vector<108x512xbf16>, vector<8x512xf32> -> vector<8x512xf32>
    %c0_4 = arith.constant 0 : index
    %c0_5 = arith.constant 0 : index
    %4 = vector.load %arg4[%c0_4, %c0_5] : memref<8x1xf32, #tpu.memory_space<vmem>>, vector<8x1xf32>
    %5 = vector.broadcast %4 : vector<8x1xf32> to vector<8x512xf32>
    %6 = arith.addf %3, %5 : vector<8x512xf32>
    %c0_6 = arith.constant 0 : index
    %c0_7 = arith.constant 0 : index
    %c0_8 = arith.constant 0 : index
    %7 = vector.load %arg5[%c0_6, %c0_7, %c0_8] : memref<1x8x512xf32, #tpu.memory_space<vmem>>, vector<1x8x512xf32>
    %8 = vector.shape_cast %7 : vector<1x8x512xf32> to vector<8x512xf32>
    %9 = vector.shape_cast %6 : vector<8x512xf32> to vector<1x8x512xf32>
    tpu.vector_store %arg5[%c0_6, %c0_7, %c0_8], %9 {strides = array<i32>} : memref<1x8x512xf32, #tpu.memory_space<vmem>>, vector<1x8x512xf32>,
    %c0_i32 = arith.constant 0 : i32
    %10 = arith.cmpi eq, %arg1, %c0_i32 : i32
    %11 = arith.extui %10 : i1 to i32
    %c0_i32_9 = arith.constant 0 : i32
    %12 = arith.cmpi ne, %11, %c0_i32_9 : i32
    scf.if %12 {
      %cst_24 = arith.constant 0.000000e+00 : f32
      %30 = vector.broadcast %cst_24 : f32 to vector<1x8x1xf32>
      %c0_25 = arith.constant 0 : index
      %c0_26 = arith.constant 0 : index
      %c0_27 = arith.constant 0 : index
      %31 = vector.load %arg6[%c0_25, %c0_26, %c0_27] : memref<1x8x1xf32, #tpu.memory_space<vmem>>, vector<1x8x1xf32>
      tpu.vector_store %arg6[%c0_25, %c0_26, %c0_27], %30 {strides = array<i32>} : memref<1x8x1xf32, #tpu.memory_space<vmem>>, vector<1x8x1xf32>,
      %cst_28 = arith.constant 0.000000e+00 : f32
      %32 = vector.broadcast %cst_28 : f32 to vector<1x8x1xf32>
      %c0_29 = arith.constant 0 : index
      %c0_30 = arith.constant 0 : index
      %c0_31 = arith.constant 0 : index
      %33 = vector.load %arg7[%c0_29, %c0_30, %c0_31] : memref<1x8x1xf32, #tpu.memory_space<vmem>>, vector<1x8x1xf32>
      tpu.vector_store %arg7[%c0_29, %c0_30, %c0_31], %32 {strides = array<i32>} : memref<1x8x1xf32, #tpu.memory_space<vmem>>, vector<1x8x1xf32>,
    } else {
    }
    %c0_10 = arith.constant 0 : index
    %c0_11 = arith.constant 0 : index
    %c0_12 = arith.constant 0 : index
    %13 = vector.load %arg6[%c0_10, %c0_11, %c0_12] : memref<1x8x1xf32, #tpu.memory_space<vmem>>, vector<1x8x1xf32>
    %14 = vector.shape_cast %13 : vector<1x8x1xf32> to vector<8x1xf32>
    %cst_13 = arith.constant dense<0.000000e+00> : vector<8xf32>
    %15 = vector.multi_reduction <add>, %6, %cst_13 [1] : vector<8x512xf32> to vector<8xf32>
    %16 = vector.shape_cast %15 : vector<8xf32> to vector<8x1xf32>
    %17 = arith.addf %14, %16 : vector<8x1xf32>
    %c0_14 = arith.constant 0 : index
    %c0_15 = arith.constant 0 : index
    %c0_16 = arith.constant 0 : index
    %18 = vector.load %arg6[%c0_14, %c0_15, %c0_16] : memref<1x8x1xf32, #tpu.memory_space<vmem>>, vector<1x8x1xf32>
    %19 = vector.shape_cast %18 : vector<1x8x1xf32> to vector<8x1xf32>
    %20 = vector.shape_cast %17 : vector<8x1xf32> to vector<1x8x1xf32>
    tpu.vector_store %arg6[%c0_14, %c0_15, %c0_16], %20 {strides = array<i32>} : memref<1x8x1xf32, #tpu.memory_space<vmem>>, vector<1x8x1xf32>,
    %c0_17 = arith.constant 0 : index
    %c0_18 = arith.constant 0 : index
    %c0_19 = arith.constant 0 : index
    %21 = vector.load %arg7[%c0_17, %c0_18, %c0_19] : memref<1x8x1xf32, #tpu.memory_space<vmem>>, vector<1x8x1xf32>
    %22 = vector.shape_cast %21 : vector<1x8x1xf32> to vector<8x1xf32>
    %23 = arith.mulf %6, %6 : vector<8x512xf32>
    %cst_20 = arith.constant dense<0.000000e+00> : vector<8xf32>
    %24 = vector.multi_reduction <add>, %23, %cst_20 [1] : vector<8x512xf32> to vector<8xf32>
    %25 = vector.shape_cast %24 : vector<8xf32> to vector<8x1xf32>
    %26 = arith.addf %22, %25 : vector<8x1xf32>
    %c0_21 = arith.constant 0 : index
    %c0_22 = arith.constant 0 : index
    %c0_23 = arith.constant 0 : index
    %27 = vector.load %arg7[%c0_21, %c0_22, %c0_23] : memref<1x8x1xf32, #tpu.memory_space<vmem>>, vector<1x8x1xf32>
    %28 = vector.shape_cast %27 : vector<1x8x1xf32> to vector<8x1xf32>
    %29 = vector.shape_cast %26 : vector<8x1xf32> to vector<1x8x1xf32>
    tpu.vector_store %arg7[%c0_21, %c0_22, %c0_23], %29 {strides = array<i32>} : memref<1x8x1xf32, #tpu.memory_space<vmem>>, vector<1x8x1xf32>,
    return
  }
  func.func @transform_0(%arg0: i32, %arg1: i32) -> (i32, i32, i32) {
    %c0_i32 = arith.constant 0 : i32
    %c0_i32_0 = arith.constant 0 : i32
    return %arg0, %c0_i32, %arg1 : i32, i32, i32
  }
  func.func @transform_1(%arg0: i32, %arg1: i32) -> (i32, i32) {
    %c0_i32 = arith.constant 0 : i32
    %c0_i32_0 = arith.constant 0 : i32
    %c0_i32_1 = arith.constant 0 : i32
    return %c0_i32, %c0_i32_0 : i32, i32
  }
  func.func @transform_2(%arg0: i32, %arg1: i32) -> (i32, i32) {
    %c0_i32 = arith.constant 0 : i32
    %c0_i32_0 = arith.constant 0 : i32
    %c0_i32_1 = arith.constant 0 : i32
    return %c0_i32, %c0_i32_0 : i32, i32
  }
  func.func @transform_3(%arg0: i32, %arg1: i32) -> (i32, i32, i32) {
    %c0_i32 = arith.constant 0 : i32
    %c0_i32_0 = arith.constant 0 : i32
    return %arg0, %c0_i32, %arg1 : i32, i32, i32
  }
  func.func @transform_4(%arg0: i32, %arg1: i32) -> (i32, i32, i32) {
    %c0_i32 = arith.constant 0 : i32
    %c0_i32_0 = arith.constant 0 : i32
    %c0_i32_1 = arith.constant 0 : i32
    return %arg0, %c0_i32, %c0_i32_0 : i32, i32, i32
  }
  func.func @transform_5(%arg0: i32, %arg1: i32) -> (i32, i32, i32) {
    %c0_i32 = arith.constant 0 : i32
    %c0_i32_0 = arith.constant 0 : i32
    %c0_i32_1 = arith.constant 0 : i32
    return %arg0, %c0_i32, %c0_i32_0 : i32, i32, i32
  }
}

</mosaic_0001>

<llo_original>
// kernel: tpu_custom_call.1
$region0: #{tpu_custom_call.1}
  #allocation0 [shape = 'u32[]', space=smem, size = 0x4, offset = 0x4, fixed_abs, tag = 'smem constant byte address 0x4 - core index']
  #allocation1 [shape = 'u32[144,128]{1,0:T(1,128)}', space=vmem, size = 0x12000, scoped, tag = 'internal scratch']
  %s0 = inlined_call_operand.vmem [shape: bf16[2,108,512], index: 0, kind: input, shape index: {}]
  %s1 = inlined_call_operand.vmem [shape: bf16[8,108], index: 1, kind: input, shape index: {}]
  %s2 = inlined_call_operand.vmem [shape: f32[8,1], index: 2, kind: input, shape index: {}]
  %s3 = inlined_call_operand.hbm [shape: f32[2,8,512], index: 3, kind: output, shape index: {0}]
  %s4 = inlined_call_operand.vmem [shape: f32[2,8,1], index: 4, kind: output, shape index: {1}]
  %s5 = inlined_call_operand.vmem [shape: f32[2,8,1], index: 5, kind: output, shape index: {2}]
  %6 = xla_tuple %s3, %s4, %s5
  %s7 = sld [smem:[#allocation0]]
  $region65: #{tpu_custom_call.1} parent=0
    _
  %s9 = ssub.s32 1, %s7
  %s10 = scalar_select 0, %s9, %s7
  $region1: #{tpu_custom_call.1} parent=0
    #allocation2 [shape = 'u8[32768]{0}', space=vmem, size = 0x8000, scoped, tag = 'output window, operand 0']
    #allocation3 [shape = 's32[2]{0}', space=sflag, size = 0x8, scoped, tag = 'scoped memory for tpu_custom_call.1']
    %11 = vsyncpa [#allocation3], 0
    %s12 = scalar_lea.sflag [#allocation3], 1
    %13 = vsyncpa %s12, 0
    loop: start=0, step=1, limit=4
    $region2: #{tpu_custom_call.1} parent=1 // loop_pre_header
      _
    $region3: #{tpu_custom_call.1} parent=1 // loop_header
      %s15 = sphi 0, %s19
      %p16 = scmp.ge.s32.totalorder %s15, 4
      %s22 = sphi 0, %s34
      %s23 = sphi 0, %s30
      %s24 = sphi 0, %s22
      %s25 = sphi 0, %s23
      %s26 = sphi 0, %s24
      %s27 = sphi 0, %s25
      %s39 = sphi 0, %s41
      %s42 = sphi 0, %s39
      %s43 = sphi 0, %s42
      %s59 = sphi 0, %s43
      %s63 = sphi 0, %s63
      %s65 = sphi 0, %s63
      %s66 = sphi 0, %s65
      %s80 = sphi 0, %s66
      %s84 = sphi 0, %s84
      %s86 = sphi 0, %s84
      %s87 = sphi 0, %s86
      %s101 = sphi 0, %s87
      %s109 = sphi 0, %s111
      %s112 = sphi 0, %s109
      %s113 = sphi 0, %s112
      %s129 = sphi 0, %s113
      %s135 = sphi 0, %s137
      %s138 = sphi 0, %s135
      %s139 = sphi 0, %s138
      %s155 = sphi 0, %s139
      %s161 = sphi 0, %s163
      %s164 = sphi 0, %s161
      %s165 = sphi 0, %s164
      %s181 = sphi 0, %s165
    $region4: #{tpu_custom_call.1} parent=1 // loop_header_branch
      %18 = sbr.rel (%p16) target = $region8
    $region5: #{tpu_custom_call.1} parent=1 // loop_body
      %s20 = ssub.s32 %s15, 1
      %s21 = ssub.s32 %s15, 2
      %s28 = sadd.s32 1, %s23
      %p29 = scmp.ge.s32.totalorder %s28, 1
      %s30 = scalar_select %p29, 0, %s28
      %s31 = sadd.s32 1, %s22
      %s32 = scalar_select %p29, %s31, %s22
      %p33 = scmp.ge.s32.totalorder %s32, 2
      %s34 = scalar_select %p33, 0, %s32
      %s35 = ssub.s32 %s22, %s34
      %s36 = ssub.s32 %s23, %s30
      %s37 = sor.u32 %s35, %s36
      %p38 = scmp.eq.s32.totalorder %s37, 0
      %s40 = sadd.s32 %s39, 1
      %s41 = scalar_select %p38, %s39, %s40
      %p44 = pneg %p38
      %p45 = scmp.eq.s32.totalorder %s15, 1
      %p46 = por %p44, %p45
      %p47 = scmp.ne.s32.totalorder %s39, %s42
      %p48 = scmp.eq.s32.totalorder %s15, 0
      %p49 = por %p47, %p48
      %p50 = scmp.ne.s32.totalorder %s39, %s42
      %p51 = scmp.eq.s32.totalorder %s20, 1
      %p52 = por %p50, %p51
      %p53 = scmp.ne.s32.totalorder %s42, %s43
      %p54 = scmp.eq.s32.totalorder %s20, 0
      %p55 = por %p53, %p54
      %p56 = scmp.ne.s32.totalorder %s42, %s43
      %p57 = scmp.eq.s32.totalorder %s21, 1
      %p58 = por %p56, %p57
      %p60 = scmp.ne.s32.totalorder %s43, %s59
      %p61 = scmp.eq.s32.totalorder %s21, 0
      %p62 = por %p60, %p61
      %s64 = sadd.s32 %s63, 1
      %p67 = scmp.eq.s32.totalorder %s15, 1
      %p68 = scmp.ne.s32.totalorder %s63, %s65
      %p69 = scmp.eq.s32.totalorder %s15, 0
      %p70 = por %p68, %p69
      %p71 = scmp.ne.s32.totalorder %s63, %s65
      %p72 = scmp.eq.s32.totalorder %s20, 1
      %p73 = por %p71, %p72
      %p74 = scmp.ne.s32.totalorder %s65, %s66
      %p75 = scmp.eq.s32.totalorder %s20, 0
      %p76 = por %p74, %p75
      %p77 = scmp.ne.s32.totalorder %s65, %s66
      %p78 = scmp.eq.s32.totalorder %s21, 1
      %p79 = por %p77, %p78
      %p81 = scmp.ne.s32.totalorder %s66, %s80
      %p82 = scmp.eq.s32.totalorder %s21, 0
      %p83 = por %p81, %p82
      %s85 = sadd.s32 %s84, 1
      %p88 = scmp.eq.s32.totalorder %s15, 1
      %p89 = scmp.ne.s32.totalorder %s84, %s86
      %p90 = scmp.eq.s32.totalorder %s15, 0
      %p91 = por %p89, %p90
      %p92 = scmp.ne.s32.totalorder %s84, %s86
      %p93 = scmp.eq.s32.totalorder %s20, 1
      %p94 = por %p92, %p93
      %p95 = scmp.ne.s32.totalorder %s86, %s87
      %p96 = scmp.eq.s32.totalorder %s20, 0
      %p97 = por %p95, %p96
      %p98 = scmp.ne.s32.totalorder %s86, %s87
      %p99 = scmp.eq.s32.totalorder %s21, 1
      %p100 = por %p98, %p99
      %p102 = scmp.ne.s32.totalorder %s87, %s101
      %p103 = scmp.eq.s32.totalorder %s21, 0
      %p104 = por %p102, %p103
      %s105 = ssub.s32 %s22, %s34
      %s106 = ssub.s32 %s23, %s30
      %s107 = sor.u32 %s105, %s106
      %p108 = scmp.eq.s32.totalorder %s107, 0
      %s110 = sadd.s32 %s109, 1
      %s111 = scalar_select %p108, %s109, %s110
      %p114 = pneg %p108
      %p115 = scmp.eq.s32.totalorder %s15, 1
      %p116 = por %p114, %p115
      %p117 = scmp.ne.s32.totalorder %s109, %s112
      %p118 = scmp.eq.s32.totalorder %s15, 0
      %p119 = por %p117, %p118
      %p120 = scmp.ne.s32.totalorder %s109, %s112
      %p121 = scmp.eq.s32.totalorder %s20, 1
      %p122 = por %p120, %p121
      %p123 = scmp.ne.s32.totalorder %s112, %s113
      %p124 = scmp.eq.s32.totalorder %s20, 0
      %p125 = por %p123, %p124
      %p126 = scmp.ne.s32.totalorder %s112, %s113
      %p127 = scmp.eq.s32.totalorder %s21, 1
      %p128 = por %p126, %p127
      %p130 = scmp.ne.s32.totalorder %s113, %s129
      %p131 = scmp.eq.s32.totalorder %s21, 0
      %p132 = por %p130, %p131
      %s133 = ssub.s32 %s22, %s34
      %p134 = scmp.eq.s32.totalorder %s133, 0
      %s136 = sadd.s32 %s135, 1
      %s137 = scalar_select %p134, %s135, %s136
      %p140 = pneg %p134
      %p141 = scmp.eq.s32.totalorder %s15, 1
      %p142 = por %p140, %p141
      %p143 = scmp.ne.s32.totalorder %s135, %s138
      %p144 = scmp.eq.s32.totalorder %s15, 0
      %p145 = por %p143, %p144
      %p146 = scmp.ne.s32.totalorder %s135, %s138
      %p147 = scmp.eq.s32.totalorder %s20, 1
      %p148 = por %p146, %p147
      %p149 = scmp.ne.s32.totalorder %s138, %s139
      %p150 = scmp.eq.s32.totalorder %s20, 0
      %p151 = por %p149, %p150
      %p152 = scmp.ne.s32.totalorder %s138, %s139
      %p153 = scmp.eq.s32.totalorder %s21, 1
      %p154 = por %p152, %p153
      %p156 = scmp.ne.s32.totalorder %s139, %s155
      %p157 = scmp.eq.s32.totalorder %s21, 0
      %p158 = por %p156, %p157
      %s159 = ssub.s32 %s22, %s34
      %p160 = scmp.eq.s32.totalorder %s159, 0
      %s162 = sadd.s32 %s161, 1
      %s163 = scalar_select %p160, %s161, %s162
      %p166 = pneg %p160
      %p167 = scmp.eq.s32.totalorder %s15, 1
      %p168 = por %p166, %p167
      %p169 = scmp.ne.s32.totalorder %s161, %s164
      %p170 = scmp.eq.s32.totalorder %s15, 0
      %p171 = por %p169, %p170
      %p172 = scmp.ne.s32.totalorder %s161, %s164
      %p173 = scmp.eq.s32.totalorder %s20, 1
      %p174 = por %p172, %p173
      %p175 = scmp.ne.s32.totalorder %s164, %s165
      %p176 = scmp.eq.s32.totalorder %s20, 0
      %p177 = por %p175, %p176
      %p178 = scmp.ne.s32.totalorder %s164, %s165
      %p179 = scmp.eq.s32.totalorder %s21, 1
      %p180 = por %p178, %p179
      %p182 = scmp.ne.s32.totalorder %s165, %s181
      %p183 = scmp.eq.s32.totalorder %s21, 0
      %p184 = por %p182, %p183
      %p185 = scmp.le.s32.totalorder 1, %s15
      %p186 = scmp.lt.s32.totalorder %s15, 3
      %p187 = pnand %p185, %p186
      %p188 = pneg %p187
      // Predicated region
      $region9: #{tpu_custom_call.1} parent=5 // pred_check
        _
      $region10: #{tpu_custom_call.1} parent=5 // pred_check_branch
        %190 = sbr.rel (%p187) target = $region12
      $region11: #{tpu_custom_call.1} parent=5 // pred_region
        %s191 = ssub.s32 %s15, 1
        // Predicated region
        $region13: #{tpu_custom_call.1} parent=11 // pred_check
          %p192 = pneg %p76
        $region14: #{tpu_custom_call.1} parent=11 // pred_check_branch
          %194 = sbr.rel (%p192) target = $region16
        $region15: #{tpu_custom_call.1} parent=11 // pred_region
          _
        $region16: #{tpu_custom_call.1} parent=11 // pred_fallthru
          _
        // Predicated region
        $region17: #{tpu_custom_call.1} parent=11 // pred_check
          %p195 = pneg %p97
        $region18: #{tpu_custom_call.1} parent=11 // pred_check_branch
          %197 = sbr.rel (%p195) target = $region20
        $region19: #{tpu_custom_call.1} parent=11 // pred_region
          _
        $region20: #{tpu_custom_call.1} parent=11 // pred_fallthru
          _
      $region12: #{tpu_custom_call.1} parent=5 // pred_fallthru
        _
      %p198 = scmp.lt.s32.totalorder %s15, 2
      // Predicated region
      $region21: #{tpu_custom_call.1} parent=5 // pred_check
        %p199 = pneg %p198
      $region22: #{tpu_custom_call.1} parent=5 // pred_check_branch
        %201 = sbr.rel (%p199) target = $region24
      $region23: #{tpu_custom_call.1} parent=5 // pred_region
        // Predicated region
        $region25: #{tpu_custom_call.1} parent=23 // pred_check
          %p202 = pneg %p49
        $region26: #{tpu_custom_call.1} parent=23 // pred_check_branch
          %204 = sbr.rel (%p202) target = $region28
        $region27: #{tpu_custom_call.1} parent=23 // pred_region
          %s205 = smul.u32 4, %s23
          %p206 = scmp.lt.s32.totalorder %s22, 1
          %s207 = scalar_select %p206, %s22, 1
          %p208 = scmp.lt.s32.totalorder %s205, 3
          %s209 = scalar_select %p208, %s205, 3
          %s210 = smul.addr %s207, 56
          %s211 = sadd.s32 %s209, %s210
          %s212 = smul.addr %s211, 4
          %s213 = scalar_lea.vmem %s0, %s212
          %s214 = smul.u32 4, %s23
        $region28: #{tpu_custom_call.1} parent=23 // pred_fallthru
          _
      $region24: #{tpu_custom_call.1} parent=5 // pred_fallthru
        _
      %p215 = scmp.le.s32.totalorder 1, %s15
      %p216 = scmp.lt.s32.totalorder %s15, 3
      %p217 = pnand %p215, %p216
      %p218 = pneg %p217
      // Predicated region
      $region29: #{tpu_custom_call.1} parent=5 // pred_check
        _
      $region30: #{tpu_custom_call.1} parent=5 // pred_check_branch
        %220 = sbr.rel (%p217) target = $region32
      $region31: #{tpu_custom_call.1} parent=5 // pred_region
        %s221 = ssub.s32 %s15, 1
        %s222 = smul.u32 4, %s25
        %p223 = scmp.lt.s32.totalorder %s24, 1
        %s224 = scalar_select %p223, %s24, 1
        %p225 = scmp.lt.s32.totalorder %s222, 3
        %s226 = scalar_select %p225, %s222, 3
        %s227 = smul.addr %s224, 56
        %s228 = sadd.s32 %s226, %s227
        %s229 = smul.addr %s228, 4
        %s230 = scalar_lea.vmem %s0, %s229
        %p231 = pneg %p55
        %p232 = pneg %p52
        %p233 = pneg %p76
        %p234 = pneg %p73
        %p235 = pneg %p97
        %p236 = pneg %p94
        %p237 = pneg %p125
        %p238 = pneg %p122
        %s239 = sand.u32 %s112, 1
        %s240 = scalar_lea.sflag [#allocation3], %s239
        %s241 = sand.u32 %s112, 1
        %s242 = smul.addr %s241, 32
        %s243 = scalar_lea.vmem [#allocation2], %s242
        %p244 = pneg %p151
        %p245 = pneg %p148
        %p246 = scmp.lt.s32.totalorder %s24, 1
        %s247 = scalar_select %p246, %s24, 1
        %s248 = smul.addr %s247, 8
        %s249 = scalar_lea.vmem %s4, %s248
        %p250 = pneg %p177
        %p251 = pneg %p174
        %p252 = scmp.lt.s32.totalorder %s24, 1
        %s253 = scalar_select %p252, %s24, 1
        %s254 = smul.addr %s253, 8
        %s255 = scalar_lea.vmem %s5, %s254
        %s256 = smul.u32 4, %s25
        %p257 = scmp.lt.s32.totalorder %s24, 1
        %s258 = scalar_select %p257, %s24, 1
        %p259 = scmp.lt.s32.totalorder %s256, 3
        %s260 = scalar_select %p259, %s256, 3
        %s261 = smul.addr %s258, 56
        %s262 = sadd.s32 %s260, %s261
        %s263 = smul.addr %s262, 4
        %s264 = scalar_lea.vmem %s0, %s263
        %s265 = smul.u32 4, %s25
        %s266 = smul.u32 4, %s25
        %p267 = scmp.lt.s32.totalorder %s24, 1
        %s268 = scalar_select %p267, %s24, 1
        %s269 = smul.addr %s268, 8
        %s270 = scalar_lea.vmem %s4, %s269
        %p271 = scmp.lt.s32.totalorder %s24, 1
        %s272 = scalar_select %p271, %s24, 1
        %s273 = smul.addr %s272, 8
        %s274 = scalar_lea.vmem %s5, %s273
        %v276 = vld [vmem:[%s1] sm:$0xf]
        %v277 = vld [vmem:[%s264] sm:$0xff]
        %v278 = vld [vmem:[%s264 + $0x8] sm:$0xff]
        %v279 = vld [vmem:[%s264 + $0x10] sm:$0xff]
        %v280 = vld [vmem:[%s264 + $0x18] sm:$0xff]
        %v281 = vld [vmem:[%s264 + $0x20] sm:$0xff]
        %v282 = vld [vmem:[%s264 + $0x28] sm:$0xff]
        %v283 = vld [vmem:[%s264 + $0x30] sm:$0xff]
        %v284 = vld [vmem:[%s264 + $0x38] sm:$0xff]
        %v285 = vld [vmem:[%s264 + $0x40] sm:$0xff]
        %v286 = vld [vmem:[%s264 + $0x48] sm:$0xff]
        %v287 = vld [vmem:[%s264 + $0x50] sm:$0xff]
        %v288 = vld [vmem:[%s264 + $0x58] sm:$0xff]
        %v289 = vld [vmem:[%s264 + $0x60] sm:$0xff]
        %v290 = vld [vmem:[%s264 + $0x68] sm:$0xff]
        %v291 = vld [vmem:[%s264 + $0x70] sm:$0xff]
        %v292 = vld [vmem:[%s264 + $0x78] sm:$0xff]
        %v293 = vld [vmem:[%s264 + $0x80] sm:$0xff]
        %v294 = vld [vmem:[%s264 + $0x88] sm:$0xff]
        %v295 = vld [vmem:[%s264 + $0x90] sm:$0xff]
        %v296 = vld [vmem:[%s264 + $0x98] sm:$0xff]
        %v297 = vld [vmem:[%s264 + $0xa0] sm:$0xff]
        %v298 = vld [vmem:[%s264 + $0xa8] sm:$0xff]
        %v299 = vld [vmem:[%s264 + $0xb0] sm:$0xff]
        %v300 = vld [vmem:[%s264 + $0xb8] sm:$0xff]
        %v301 = vld [vmem:[%s264 + $0xc0] sm:$0xff]
        %v302 = vld [vmem:[%s264 + $0xc8] sm:$0xff]
        %v303 = vld [vmem:[%s264 + $0xd0] sm:$0x33]
        %v304 = vld [vmem:[%s264 + $0xd8] sm:$0x33]
        %v305 = vld [vmem:[%s2] sm:$0xff]
        %307 = vset.pattern.permute.xlu0 0
        %308 = vperm.xlu0 %307, %v305
        %v309 = vpop.permute.xlu0 %308
        %v339 = vunpack.c.l.b16 %v277
        %v340 = vunpack.c.h.b16 %v277
        %v341 = vunpack.c.l.b16 %v278
        %v342 = vunpack.c.h.b16 %v278
        %v343 = vunpack.c.l.b16 %v279
        %v344 = vunpack.c.h.b16 %v279
        %v345 = vunpack.c.l.b16 %v280
        %v346 = vunpack.c.h.b16 %v280
        %v347 = vunpack.c.l.b16 %v281
        %v348 = vunpack.c.h.b16 %v281
        %v349 = vunpack.c.l.b16 %v282
        %v350 = vunpack.c.h.b16 %v282
        %v351 = vunpack.c.l.b16 %v283
        %v352 = vunpack.c.h.b16 %v283
        %v353 = vunpack.c.l.b16 %v284
        %v354 = vunpack.c.h.b16 %v284
        %v355 = vunpack.c.l.b16 %v285
        %v356 = vunpack.c.h.b16 %v285
        %v357 = vunpack.c.l.b16 %v286
        %v358 = vunpack.c.h.b16 %v286
        %v359 = vunpack.c.l.b16 %v287
        %v360 = vunpack.c.h.b16 %v287
        %v361 = vunpack.c.l.b16 %v288
        %v362 = vunpack.c.h.b16 %v288
        %v363 = vunpack.c.l.b16 %v289
        %v364 = vunpack.c.h.b16 %v289
        %v365 = vunpack.c.l.b16 %v290
        %v366 = vunpack.c.h.b16 %v290
        %v367 = vunpack.c.l.b16 %v291
        %v368 = vunpack.c.h.b16 %v291
        %v369 = vunpack.c.l.b16 %v292
        %v370 = vunpack.c.h.b16 %v292
        %v371 = vunpack.c.l.b16 %v293
        %v372 = vunpack.c.h.b16 %v293
        %v373 = vunpack.c.l.b16 %v294
        %v374 = vunpack.c.h.b16 %v294
        %v375 = vunpack.c.l.b16 %v295
        %v376 = vunpack.c.h.b16 %v295
        %v377 = vunpack.c.l.b16 %v296
        %v378 = vunpack.c.h.b16 %v296
        %v379 = vunpack.c.l.b16 %v297
        %v380 = vunpack.c.h.b16 %v297
        %v381 = vunpack.c.l.b16 %v298
        %v382 = vunpack.c.h.b16 %v298
        %v383 = vunpack.c.l.b16 %v299
        %v384 = vunpack.c.h.b16 %v299
        %v385 = vunpack.c.l.b16 %v300
        %v386 = vunpack.c.h.b16 %v300
        %v387 = vunpack.c.l.b16 %v301
        %v388 = vunpack.c.h.b16 %v301
        %v389 = vunpack.c.l.b16 %v302
        %v390 = vunpack.c.h.b16 %v302
        %v391 = vunpack.c.l.b16 %v303
        %v392 = vunpack.c.h.b16 %v303
        %v393 = vunpack.c.l.b16 %v304
        %v394 = vunpack.c.h.b16 %v304
        %v395 = vpack.c.b16 %v343, %v339
        %v396 = vpack.c.b16 %v344, %v340
        %v397 = vpack.c.b16 %v345, %v341
        %v398 = vpack.c.b16 %v346, %v342
        %v399 = vpack.c.b16 %v351, %v347
        %v400 = vpack.c.b16 %v352, %v348
        %v401 = vpack.c.b16 %v353, %v349
        %v402 = vpack.c.b16 %v354, %v350
        %v403 = vpack.c.b16 %v359, %v355
        %v404 = vpack.c.b16 %v360, %v356
        %v405 = vpack.c.b16 %v361, %v357
        %v406 = vpack.c.b16 %v362, %v358
        %v407 = vpack.c.b16 %v367, %v363
        %v408 = vpack.c.b16 %v368, %v364
        %v409 = vpack.c.b16 %v369, %v365
        %v410 = vpack.c.b16 %v370, %v366
        %v411 = vpack.c.b16 %v375, %v371
        %v412 = vpack.c.b16 %v376, %v372
        %v413 = vpack.c.b16 %v377, %v373
        %v414 = vpack.c.b16 %v378, %v374
        %v415 = vpack.c.b16 %v383, %v379
        %v416 = vpack.c.b16 %v384, %v380
        %v417 = vpack.c.b16 %v385, %v381
        %v418 = vpack.c.b16 %v386, %v382
        %v419 = vpack.c.b16 %v391, %v387
        %v420 = vpack.c.b16 %v392, %v388
        %v421 = vpack.c.b16 %v393, %v389
        %v422 = vpack.c.b16 %v394, %v390
        %vm447 = vcmask 883712
        %v449 = vsel %vm447, %v276, 0
        %vm451 = vcmask 1045504
        %v453 = vsel %vm451, %v419, 0
        %v456 = vsel %vm451, %v420, 0
        %v459 = vsel %vm451, %v421, 0
        %v462 = vsel %vm451, %v422, 0
        %464 = vmatprep.subr.bf16.mxu0 0
        %465 = vmatpush1.bf16.msra.mxu0 0
        %466 = vmatprep.subr.bf16.mxu0 %v456
        %467 = vmatpush1.bf16.msra.mxu0 %v453
        %468 = vmatprep.subr.bf16.mxu0 %v416
        %469 = vmatpush1.bf16.msra.mxu0 %v415
        %470 = vmatprep.subr.bf16.mxu0 %v412
        %471 = vmatpush1.bf16.msra.mxu0 %v411
        %472 = vmatprep.subr.bf16.mxu0 %v408
        %473 = vmatpush1.bf16.msra.mxu0 %v407
        %474 = vmatprep.subr.bf16.mxu0 %v404
        %475 = vmatpush1.bf16.msra.mxu0 %v403
        %476 = vmatprep.subr.bf16.mxu0 %v400
        %477 = vmatpush1.bf16.msra.mxu0 %v399
        %478 = vmatprep.subr.bf16.mxu0 %v396
        %479 = vmatpush1.bf16.msra.mxu0 %v395
        %480 = vmatprep.subr.bf16.mxu0 0
        %481 = vmatpush2.bf16.msra.mxu0 0
        %482 = vmatprep.subr.bf16.mxu0 0
        %483 = vmatpush2.bf16.msra.mxu0 0
        %484 = vmatprep.subr.bf16.mxu0 0
        %485 = vmatpush2.bf16.msra.mxu0 0
        %486 = vmatprep.subr.bf16.mxu0 0
        %487 = vmatpush2.bf16.msra.mxu0 0
        %488 = vmatprep.subr.bf16.mxu0 0
        %489 = vmatpush2.bf16.msra.mxu0 0
        %490 = vmatprep.subr.bf16.mxu0 0
        %491 = vmatpush2.bf16.msra.mxu0 0
        %492 = vmatprep.subr.bf16.mxu0 0
        %493 = vmatpush2.bf16.msra.mxu0 0
        %494 = vmatprep.subr.bf16.mxu0 0
        %495 = vmatpush2.bf16.msra.mxu0 0
        %496 = vmatprep.mubr.bf16.mxu0 0
        %497 = vmatmul.mubr.bf16.gmra.mxu0 %v449
        %v498 = vpop.f32.mrf.mxu0
        %v499 = vadd.f32 %v309, %v498
        %v500 = vpop.f32.mrf.mxu0
        %v501 = vadd.f32 %v309, %v500
        %v502 = vpop.f32.mrf.mxu0
        %v503 = vpop.f32.mrf.mxu0
        %504 = vdwg.mxu0
        %505 = vmatprep.subr.bf16.mxu0 0
        %506 = vmatpush1.bf16.msra.mxu0 0
        %507 = vmatprep.subr.bf16.mxu0 %v462
        %508 = vmatpush1.bf16.msra.mxu0 %v459
        %509 = vmatprep.subr.bf16.mxu0 %v418
        %510 = vmatpush1.bf16.msra.mxu0 %v417
        %511 = vmatprep.subr.bf16.mxu0 %v414
        %512 = vmatpush1.bf16.msra.mxu0 %v413
        %513 = vmatprep.subr.bf16.mxu0 %v410
        %514 = vmatpush1.bf16.msra.mxu0 %v409
        %515 = vmatprep.subr.bf16.mxu0 %v406
        %516 = vmatpush1.bf16.msra.mxu0 %v405
        %517 = vmatprep.subr.bf16.mxu0 %v402
        %518 = vmatpush1.bf16.msra.mxu0 %v401
        %519 = vmatprep.subr.bf16.mxu0 %v398
        %520 = vmatpush1.bf16.msra.mxu0 %v397
        %521 = vmatprep.subr.bf16.mxu0 0
        %522 = vmatpush2.bf16.msra.mxu0 0
        %523 = vmatprep.subr.bf16.mxu0 0
        %524 = vmatpush2.bf16.msra.mxu0 0
        %525 = vmatprep.subr.bf16.mxu0 0
        %526 = vmatpush2.bf16.msra.mxu0 0
        %527 = vmatprep.subr.bf16.mxu0 0
        %528 = vmatpush2.bf16.msra.mxu0 0
        %529 = vmatprep.subr.bf16.mxu0 0
        %530 = vmatpush2.bf16.msra.mxu0 0
        %531 = vmatprep.subr.bf16.mxu0 0
        %532 = vmatpush2.bf16.msra.mxu0 0
        %533 = vmatprep.subr.bf16.mxu0 0
        %534 = vmatpush2.bf16.msra.mxu0 0
        %535 = vmatprep.subr.bf16.mxu0 0
        %536 = vmatpush2.bf16.msra.mxu0 0
        %537 = vmatprep.mubr.bf16.mxu0 0
        %538 = vmatmul.mubr.bf16.gmra.mxu0 %v449
        %v539 = vpop.f32.mrf.mxu0
        %v540 = vadd.f32 %v309, %v539
        %v541 = vpop.f32.mrf.mxu0
        %v542 = vadd.f32 %v309, %v541
        %v543 = vpop.f32.mrf.mxu0
        %v544 = vpop.f32.mrf.mxu0
        %545 = vdwg.mxu0
        %546 = vst [vmem:[%s243] sm:$0xff] %v499
        %547 = vst [vmem:[%s243 + $0x8] sm:$0xff] %v501
        %548 = vst [vmem:[%s243 + $0x10] sm:$0xff] %v540
        %549 = vst [vmem:[%s243 + $0x18] sm:$0xff] %v542
        %p550 = scmp.eq.s32.totalorder %s25, 0
        // Predicated region
        $region33: #{tpu_custom_call.1} parent=31 // pred_check
          %p551 = pneg %p550
        $region34: #{tpu_custom_call.1} parent=31 // pred_check_branch
          %553 = sbr.rel (%p551) target = $region36
        $region35: #{tpu_custom_call.1} parent=31 // pred_region
          %vm554 = vcmask 7168
          %555 = vst.msk [vmem:[%s270] sm:$0xff] %vm554, 0.0
          %556 = vst.msk [vmem:[%s274] sm:$0xff] %vm554, 0.0
        $region36: #{tpu_custom_call.1} parent=31 // pred_fallthru
          _
        %v557 = vld [vmem:[%s270] sm:$0xff]
        %v558 = vadd.f32 %v499, %v501
        %v559 = vadd.f32 %v558, %v540
        %v560 = vadd.f32 %v559, %v542
        %561 = vadd.xlane.f32.xlu0 %v560
        %v562 = vpop.xlane.xlu0 %561
        %v563 = vadd.f32 %v557, %v562
        %vm564 = vcmask 7168
        %565 = vst.msk [vmem:[%s270] sm:$0xff] %vm564, %v563
        %v566 = vld [vmem:[%s274] sm:$0xff]
        %v567 = vmul.f32 %v499, %v499
        %v568 = vmul.f32 %v501, %v501
        %v569 = vmul.f32 %v540, %v540
        %v570 = vmul.f32 %v542, %v542
        %v571 = vadd.f32 %v567, %v568
        %v572 = vadd.f32 %v571, %v569
        %v573 = vadd.f32 %v572, %v570
        %574 = vadd.xlane.f32.xlu0 %v573
        %v575 = vpop.xlane.xlu0 %574
        %v576 = vadd.f32 %v566, %v575
        %577 = vst.msk [vmem:[%s274] sm:$0xff] %vm564, %v576
        %s578 = sand.u32 %s112, 1
        %s579 = scalar_lea.sflag [#allocation3], %s578
        %s580 = sand.u32 %s112, 1
        %s581 = smul.addr %s580, 32
        %s582 = scalar_lea.vmem [#allocation2], %s581
        %p583 = scmp.lt.s32.totalorder %s24, 1
        %s584 = scalar_select %p583, %s24, 1
        %s585 = smul.addr %s584, 8
        %s586 = scalar_lea.vmem %s4, %s585
        %p587 = scmp.lt.s32.totalorder %s24, 1
        %s588 = scalar_select %p587, %s24, 1
        %s589 = smul.addr %s588, 8
        %s590 = scalar_lea.vmem %s5, %s589
        // Predicated region
        $region37: #{tpu_custom_call.1} parent=31 // pred_check
          %p591 = pneg %p122
        $region38: #{tpu_custom_call.1} parent=31 // pred_check_branch
          %593 = sbr.rel (%p591) target = $region40
        $region39: #{tpu_custom_call.1} parent=31 // pred_region
          %s594 = smul.u32 4, %s25
          %s596 = ssub.s32 512, 512
          %597 = vsyncadd %s579, %s596
          %s598 = smul.addr %s24, 4
          %s599 = sadd.s32 %s594, %s598
          %s600 = smul.addr %s599, 128
          %s601 = scalar_lea.hbm %s3, %s600
          %s603 = sshll.u32 %s582, 4
          %s604 = int_to_ptr.vmem [resolvable:$true] %s603
          %606 = dma.vmem_to_hbm [thread:$0]  %s604, 512, %s601, %s579
        $region40: #{tpu_custom_call.1} parent=31 // pred_fallthru
          _
        // Predicated region
        $region41: #{tpu_custom_call.1} parent=31 // pred_check
          %p607 = pneg %p148
        $region42: #{tpu_custom_call.1} parent=31 // pred_check_branch
          %609 = sbr.rel (%p607) target = $region44
        $region43: #{tpu_custom_call.1} parent=31 // pred_region
          _
        $region44: #{tpu_custom_call.1} parent=31 // pred_fallthru
          _
        // Predicated region
        $region45: #{tpu_custom_call.1} parent=31 // pred_check
          %p610 = pneg %p174
        $region46: #{tpu_custom_call.1} parent=31 // pred_check_branch
          %612 = sbr.rel (%p610) target = $region48
        $region47: #{tpu_custom_call.1} parent=31 // pred_region
          _
        $region48: #{tpu_custom_call.1} parent=31 // pred_fallthru
          _
      $region32: #{tpu_custom_call.1} parent=5 // pred_fallthru
        _
      %p613 = scmp.le.s32.totalorder 2, %s15
      // Predicated region
      $region49: #{tpu_custom_call.1} parent=5 // pred_check
        %p614 = pneg %p613
      $region50: #{tpu_custom_call.1} parent=5 // pred_check_branch
        %616 = sbr.rel (%p614) target = $region52
      $region51: #{tpu_custom_call.1} parent=5 // pred_region
        %s617 = ssub.s32 %s15, 2
        // Predicated region
        $region53: #{tpu_custom_call.1} parent=51 // pred_check
          %p618 = pneg %p128
        $region54: #{tpu_custom_call.1} parent=51 // pred_check_branch
          %620 = sbr.rel (%p618) target = $region56
        $region55: #{tpu_custom_call.1} parent=51 // pred_region
          %s621 = sand.u32 %s113, 1
          %s622 = scalar_lea.sflag [#allocation3], %s621
          %s623 = sand.u32 %s113, 1
          %s624 = smul.addr %s623, 32
          %s625 = scalar_lea.vmem [#allocation2], %s624
          %626 = dma.done %s622, 512
        $region56: #{tpu_custom_call.1} parent=51 // pred_fallthru
          _
        // Predicated region
        $region57: #{tpu_custom_call.1} parent=51 // pred_check
          %p627 = pneg %p154
        $region58: #{tpu_custom_call.1} parent=51 // pred_check_branch
          %629 = sbr.rel (%p627) target = $region60
        $region59: #{tpu_custom_call.1} parent=51 // pred_region
          %p630 = scmp.lt.s32.totalorder %s26, 1
          %s631 = scalar_select %p630, %s26, 1
          %s632 = smul.addr %s631, 8
          %s633 = scalar_lea.vmem %s4, %s632
        $region60: #{tpu_custom_call.1} parent=51 // pred_fallthru
          _
        // Predicated region
        $region61: #{tpu_custom_call.1} parent=51 // pred_check
          %p634 = pneg %p180
        $region62: #{tpu_custom_call.1} parent=51 // pred_check_branch
          %636 = sbr.rel (%p634) target = $region64
        $region63: #{tpu_custom_call.1} parent=51 // pred_region
          %p637 = scmp.lt.s32.totalorder %s26, 1
          %s638 = scalar_select %p637, %s26, 1
          %s639 = smul.addr %s638, 8
          %s640 = scalar_lea.vmem %s5, %s639
        $region64: #{tpu_custom_call.1} parent=51 // pred_fallthru
          _
      $region52: #{tpu_custom_call.1} parent=5 // pred_fallthru
        _
    $region6: #{tpu_custom_call.1} parent=1 // loop_footer
      %s19 = sadd.s32 1, %s15
    $region7: #{tpu_custom_call.1} parent=1 // loop_footer_branch
      %14 = sbr.rel target = $region3
    $region8: #{tpu_custom_call.1} parent=1 // loop_exit
      _
    %641 = vsyncpa [#allocation3], 1
    %s642 = scalar_lea.sflag [#allocation3], 1
    %643 = vsyncpa %s642, 1

</llo_original>
